<compile_context>
chip_gen: v6e
topology: v6e:2x2x1
jax: 0.10.0
libtpu: 0.0.40
codegen_flags: <defaults>
</compile_context>

<pallas_src>
import functools
import math

import jax
import jax.numpy as jnp
from jax.experimental import pallas as pl
from jax.experimental.pallas import tpu as pltpu

_INV_SQRT2 = 0.7071067811865476
_SQRT_2_OVER_PI = 0.7978845608028654


def _round_up(x, m):
    return ((x + m - 1) // m) * m


def _gelu(y, *, approximate):
    if approximate:
        # HF "gelu_new": tanh approximation (tanh runs on the EUP slot).
        return 0.5 * y * (1.0 + jnp.tanh(_SQRT_2_OVER_PI * (y + 0.044715 * y * y * y)))
    # HF "gelu": exact erf form.
    return y * 0.5 * (1.0 + jax.lax.erf(y * _INV_SQRT2))


def _activate_and_store(y_f32, b_row, o_ref, *, approximate, bf16_epilogue):
    y = y_f32 + b_row
    if bf16_epilogue and jnp.dtype(o_ref.dtype) == jnp.dtype(jnp.bfloat16):
        # Output is bf16 anyway: do the GELU in packed bf16 (halves VPU/EUP cycles
        # on v6e/v7x; neutral on v5e which has no bf16 VALU).
        o_ref[...] = _gelu(y.astype(jnp.bfloat16), approximate=approximate)
    else:
        o_ref[...] = _gelu(y, approximate=approximate).astype(o_ref.dtype)


def _kernel_simple(x_ref, w_ref, b_ref, o_ref, *, matmul_dtype, approximate, bf16_epilogue):
    # x_ref: (TM, H)   w_ref: (H, TN)   b_ref: (1, TN) f32   o_ref: (TM, TN)
    x = x_ref[...]
    if matmul_dtype is not None and x.dtype != matmul_dtype:
        x = x.astype(matmul_dtype)  # per-tile cast, hidden under the MXU
    y = jnp.dot(x, w_ref[...], preferred_element_type=jnp.float32)
    _activate_and_store(y, b_ref[...], o_ref,
                        approximate=approximate, bf16_epilogue=bf16_epilogue)


def _kernel_ktiled(x_ref, w_ref, b_ref, o_ref, acc_ref, *, matmul_dtype, approximate,
                   bf16_epilogue):
    # x_ref: (TM, TK)   w_ref: (TK, TN)   acc_ref: (TM, TN) f32 scratch
    k = pl.program_id(2)

    @pl.when(k == 0)
    def _():
        acc_ref[...] = jnp.zeros_like(acc_ref)

    x = x_ref[...]
    if matmul_dtype is not None and x.dtype != matmul_dtype:
        x = x.astype(matmul_dtype)
    acc_ref[...] += jnp.dot(x, w_ref[...], preferred_element_type=jnp.float32)

    @pl.when(k == pl.num_programs(2) - 1)
    def _():
        _activate_and_store(acc_ref[...], b_ref[...], o_ref,
                            approximate=approximate, bf16_epilogue=bf16_epilogue)


def _pick_tile_n(I):
    # Keep the output lane-dense; only tile large I, preferring an EVEN number of
    # N steps so megacore sharding (v7x, 2 TCs) is balanced.
    if I <= 2048 or I % 128 != 0:
        return I
    divisors = [t for t in (2048, 1536, 1024, 768, 512, 384, 256, 128) if I % t == 0]
    for t in divisors:
        if (I // t) % 2 == 0:
            return t
    return divisors[0] if divisors else I


def _pick_tile_k(H, tile_n, w_itemsize):
    # K-tile only when the double-buffered weight block would eat a large chunk of
    # VMEM (matters on v7x's 64 MiB).  Requires clean divisibility (a ragged K block
    # would add garbage into the accumulation), otherwise keep the full H.
    weight_block_bytes = 2 * H * tile_n * w_itemsize
    if weight_block_bytes <= 16 * 2**20:
        return H
    for t in (2048, 1024, 512):
        if H % t == 0:
            return t
    return H


def _vmem_capacity_bytes():
    try:
        cap = getattr(pltpu.get_tpu_info(), "vmem_capacity_bytes", None)
        if cap:
            return int(cap)
    except Exception:
        pass
    return 64 * 2**20  # conservative (v7x per-TensorCore)


def bert_intermediate(
    hidden_states,
    weight,
    bias,
    *,
    tile_m=None,
    tile_n=None,
    tile_k=None,
    use_bf16_matmul=True,
    out_dtype=None,
    approximate_gelu=False,
    bf16_epilogue=True,
):
    """hidden_states: [B, S, H]
    weight: [H, I] (already transposed from PyTorch's [I, H])
    bias:   [I]
    returns [B, S, I] in `out_dtype` (default: hidden_states.dtype)
    """
    B, S, H = hidden_states.shape
    I = weight.shape[1]
    M = B * S
    if out_dtype is None:
        out_dtype = hidden_states.dtype
    out_dtype = jnp.dtype(out_dtype)

    # ---- Tile selection -------------------------------------------------------
    if tile_m is None:
        tile_m = 512
    tile_m = min(tile_m, _round_up(M, 8))
    tile_m = max(8, _round_up(tile_m, 8))
    n_m = pl.cdiv(M, tile_m)  # ragged last block is masked by Pallas (no pad/slice)

    if tile_n is None:
        tile_n = _pick_tile_n(I)
    if I % tile_n != 0:
        tile_n = I  # safety fallback: full-extent N block
    n_n = I // tile_n

    # ---- Operands (no wrapper-side cast of x; weight cast once is the big DMA) -
    x2d = hidden_states.reshape(M, H)
    matmul_dtype = jnp.bfloat16 if use_bf16_matmul else None
    w = weight.astype(jnp.bfloat16) if use_bf16_matmul else weight
    b2d = bias.astype(jnp.float32).reshape(1, I)

    if tile_k is None:
        tile_k = _pick_tile_k(H, tile_n, jnp.dtype(w.dtype).itemsize)
    if H % tile_k != 0:
        tile_k = H
    n_k = H // tile_k

    # ---- VMEM budget ------------------------------------------------------------
    bytes_x = tile_m * tile_k * jnp.dtype(x2d.dtype).itemsize
    bytes_w = tile_k * tile_n * jnp.dtype(w.dtype).itemsize
    bytes_b = tile_n * 4
    bytes_o = tile_m * tile_n * out_dtype.itemsize
    bytes_acc = tile_m * tile_n * 4 if n_k > 1 else 0
    est = 2 * (bytes_x + bytes_w + bytes_b + bytes_o) + bytes_acc  # double-buffered
    cap = min(96 * 2**20, (_vmem_capacity_bytes() * 3) // 4)       # <= ~48 MiB on v7x
    vmem_limit = int(min(cap, max(32 * 2**20, (est * 5) // 4)))

    kernel_kwargs = dict(matmul_dtype=matmul_dtype, approximate=approximate_gelu,
                         bf16_epilogue=bf16_epilogue)

    # ---- Grid: N OUTER, M INNER (weight tile stays VMEM-resident across M) ------
    if n_k == 1:
        kernel = functools.partial(_kernel_simple, **kernel_kwargs)
        grid = (n_n, n_m)
        in_specs = [
            pl.BlockSpec((tile_m, H), lambda j, i: (i, 0)),
            pl.BlockSpec((H, tile_n), lambda j, i: (0, j)),
            pl.BlockSpec((1, tile_n), lambda j, i: (0, j)),
        ]
        out_specs = pl.BlockSpec((tile_m, tile_n), lambda j, i: (i, j))
        scratch_shapes = []
        dim_sem = ("parallel", "parallel")
    else:
        kernel = functools.partial(_kernel_ktiled, **kernel_kwargs)
        grid = (n_n, n_m, n_k)
        in_specs = [
            pl.BlockSpec((tile_m, tile_k), lambda j, i, k: (i, k)),
            pl.BlockSpec((tile_k, tile_n), lambda j, i, k: (k, j)),
            pl.BlockSpec((1, tile_n), lambda j, i, k: (0, j)),
        ]
        out_specs = pl.BlockSpec((tile_m, tile_n), lambda j, i, k: (i, j))
        scratch_shapes = [pltpu.VMEM((tile_m, tile_n), jnp.float32)]
        dim_sem = ("parallel", "parallel", "arbitrary")

    out = pl.pallas_call(
        kernel,
        out_shape=jax.ShapeDtypeStruct((M, I), out_dtype),
        grid_spec=pltpu.PrefetchScalarGridSpec(
            num_scalar_prefetch=0,
            grid=grid,
            in_specs=in_specs,
            out_specs=out_specs,
            scratch_shapes=scratch_shapes,
        ),
        compiler_params=pltpu.CompilerParams(
            dimension_semantics=dim_sem,
            vmem_limit_bytes=vmem_limit,
        ),
    )(x2d, w, b2d)

    return out.reshape(B, S, I)


if __name__ == "__main__":
    # Small config consistent with BertIntermediate: hidden_size=32, intermediate_size=128
    batch, seq, hidden, intermediate = 2, 8, 32, 128

    key = jax.random.PRNGKey(0)
    k_x, k_w, k_b = jax.random.split(key, 3)

    hidden_states = jax.random.normal(k_x, (batch, seq, hidden), dtype=jnp.float32)
    # Deterministic parameter init (nn.Linear-like scale)
    bound = 1.0 / math.sqrt(hidden)
    weight = jax.random.uniform(
        k_w, (hidden, intermediate), dtype=jnp.float32, minval=-bound, maxval=bound
    )
    bias = jax.random.uniform(
        k_b, (intermediate,), dtype=jnp.float32, minval=-bound, maxval=bound
    )

    out = bert_intermediate(hidden_states, weight, bias)
    out = jax.block_until_ready(out)

    # Reference in plain JAX (f32, exact erf GELU).  Loose tolerance accounts for
    # the intentional bf16 MXU inputs (f32 accumulation).
    ref = jnp.einsum("bsh,hi->bsi", hidden_states, weight) + bias
    ref = ref * 0.5 * (1.0 + jax.lax.erf(ref * _INV_SQRT2))

    assert out.shape == (batch, seq, intermediate)
    max_err = float(jnp.max(jnp.abs(out.astype(jnp.float32) - ref)))
    assert jnp.allclose(out.astype(jnp.float32), ref, atol=2e-2, rtol=2e-2), max_err

    print("KERNEL_OK")
</pallas_src>

<mosaic_0001>
module attributes {stable_mosaic.version = 11 : i64} {
  func.func @_kernel_simple(%arg0: i32, %arg1: i32, %arg2: memref<16x32xf32, #tpu.memory_space<vmem>>, %arg3: memref<32x128xbf16, #tpu.memory_space<vmem>>, %arg4: memref<1x128xf32, #tpu.memory_space<vmem>>, %arg5: memref<16x128xf32, #tpu.memory_space<vmem>>) attributes {dimension_semantics = [#tpu.dimension_semantics<parallel>, #tpu.dimension_semantics<parallel>], iteration_bounds = array<i64: 1, 1>, scalar_prefetch = 0 : i64, scratch_operands = 0 : i64, tpu.core_type = #tpu.core_type<tc>, window_params = [{transform_indices = @transform_0, window_bounds = array<i64: 16, 32>}, {transform_indices = @transform_1, window_bounds = array<i64: 32, 128>}, {transform_indices = @transform_2, window_bounds = array<i64: 1, 128>}, {transform_indices = @transform_3, window_bounds = array<i64: 16, 128>}]} {
    %c0 = arith.constant 0 : index
    %c0_0 = arith.constant 0 : index
    %0 = vector.load %arg2[%c0, %c0_0] : memref<16x32xf32, #tpu.memory_space<vmem>>, vector<16x32xf32>
    %1 = arith.truncf %0 : vector<16x32xf32> to vector<16x32xbf16>
    %c0_1 = arith.constant 0 : index
    %c0_2 = arith.constant 0 : index
    %2 = vector.load %arg3[%c0_1, %c0_2] : memref<32x128xbf16, #tpu.memory_space<vmem>>, vector<32x128xbf16>
    %cst = arith.constant dense<0.000000e+00> : vector<16x128xf32>
    %3 = tpu.matmul %1, %2, %cst {dimension_numbers = #tpu.dot_dimension_numbers<[1], [0], [0], [1], [0, 0, 1, 1], [], []>} : vector<16x32xbf16>, vector<32x128xbf16>, vector<16x128xf32> -> vector<16x128xf32>
    %c0_3 = arith.constant 0 : index
    %c0_4 = arith.constant 0 : index
    %4 = vector.load %arg4[%c0_3, %c0_4] : memref<1x128xf32, #tpu.memory_space<vmem>>, vector<1x128xf32>
    %5 = vector.broadcast %4 : vector<1x128xf32> to vector<16x128xf32>
    %6 = arith.addf %3, %5 : vector<16x128xf32>
    %cst_5 = arith.constant 5.000000e-01 : f32
    %7 = vector.broadcast %cst_5 : f32 to vector<16x128xf32>
    %8 = arith.mulf %6, %7 : vector<16x128xf32>
    %cst_6 = arith.constant 0.707106769 : f32
    %9 = vector.broadcast %cst_6 : f32 to vector<16x128xf32>
    %10 = arith.mulf %6, %9 : vector<16x128xf32>
    %11 = math.erf %10 : vector<16x128xf32>
    %cst_7 = arith.constant 1.000000e+00 : f32
    %12 = vector.broadcast %cst_7 : f32 to vector<16x128xf32>
    %13 = arith.addf %12, %11 : vector<16x128xf32>
    %14 = arith.mulf %8, %13 : vector<16x128xf32>
    %c0_8 = arith.constant 0 : index
    %c0_9 = arith.constant 0 : index
    %15 = vector.load %arg5[%c0_8, %c0_9] : memref<16x128xf32, #tpu.memory_space<vmem>>, vector<16x128xf32>
    tpu.vector_store %arg5[%c0_8, %c0_9], %14 {strides = array<i32>} : memref<16x128xf32, #tpu.memory_space<vmem>>, vector<16x128xf32>,
    return
  }
  func.func @transform_0(%arg0: i32, %arg1: i32) -> (i32, i32) {
    %c0_i32 = arith.constant 0 : i32
    %c0_i32_0 = arith.constant 0 : i32
    return %arg1, %c0_i32 : i32, i32
  }
  func.func @transform_1(%arg0: i32, %arg1: i32) -> (i32, i32) {
    %c0_i32 = arith.constant 0 : i32
    %c0_i32_0 = arith.constant 0 : i32
    return %c0_i32, %arg0 : i32, i32
  }
  func.func @transform_2(%arg0: i32, %arg1: i32) -> (i32, i32) {
    %c0_i32 = arith.constant 0 : i32
    %c0_i32_0 = arith.constant 0 : i32
    return %c0_i32, %arg0 : i32, i32
  }
  func.func @transform_3(%arg0: i32, %arg1: i32) -> (i32, i32) {
    %c0_i32 = arith.constant 0 : i32
    return %arg1, %arg0 : i32, i32
  }
}

</mosaic_0001>

<llo_original>
// kernel: tpu_custom_call.1
$region0: #{tpu_custom_call.1}
  #allocation0 [shape = 'u32[]', space=smem, size = 0x4, offset = 0x4, fixed_abs, tag = 'smem constant byte address 0x4 - core index']
  #allocation1 [shape = 'u32[144,128]{1,0:T(1,128)}', space=vmem, size = 0x12000, scoped, tag = 'internal scratch']
  %s0 = inlined_call_operand.hbm [shape: f32[16,32], index: 0, kind: input, shape index: {}]
  %s1 = inlined_call_operand.hbm [shape: bf16[32,128], index: 1, kind: input, shape index: {}]
  %s2 = inlined_call_operand.vmem [shape: f32[1,128], index: 2, kind: input, shape index: {}]
  %s3 = inlined_call_operand.hbm [shape: f32[16,128], index: 3, kind: output, shape index: {}]
  %s4 = sld [smem:[#allocation0]]
  $region30: #{tpu_custom_call.1} parent=0
    _
  %s6 = ssub.s32 1, %s4
  %s7 = scalar_select 0, %s6, %s4
  $region1: #{tpu_custom_call.1} parent=0
    #allocation2 [shape = 'u8[8192]{0}', space=vmem, size = 0x2000, scoped, tag = 'input window, operand 0, single buffered']
    #allocation3 [shape = 's32[1]{0}', space=sflag, size = 0x4, scoped, tag = 'scoped memory for tpu_custom_call.1']
    #allocation4 [shape = 's32[1]{0}', space=sflag, size = 0x4, scoped, tag = 'scoped memory for tpu_custom_call.1']
    #allocation5 [shape = 'u8[8192]{0}', space=vmem, size = 0x2000, scoped, tag = 'input window, operand 1, single buffered']
    #allocation6 [shape = 's32[1]{0}', space=sflag, size = 0x4, scoped, tag = 'scoped memory for tpu_custom_call.1']
    #allocation7 [shape = 'u8[8192]{0}', space=vmem, size = 0x2000, scoped, tag = 'output window, operand 0, single buffered']
    %8 = vsyncpa [#allocation3], 0
    %9 = vsyncpa [#allocation6], 0
    %10 = vsyncpa [#allocation4], 0
    // Predicated region
    $region2: #{tpu_custom_call.1} parent=1 // pred_check
      _
    $region3: #{tpu_custom_call.1} parent=1 // pred_check_branch
      %12 = sbr.rel (0) target = $region5
    $region4: #{tpu_custom_call.1} parent=1 // pred_region
      %s14 = ssub.s32 256, 256
      %15 = vsyncadd [#allocation3], %s14
      %s16 = sshll.u32 [#allocation2], 4
      %s17 = int_to_ptr.vmem [resolvable:$true] %s16
      %22 = dma.hbm_to_vmem [thread:$0]  %s0, 256, %s17, [#allocation3], 128, 128, 8
    $region5: #{tpu_custom_call.1} parent=1 // pred_fallthru
      _
    // Predicated region
    $region6: #{tpu_custom_call.1} parent=1 // pred_check
      _
    $region7: #{tpu_custom_call.1} parent=1 // pred_check_branch
      %24 = sbr.rel (0) target = $region9
    $region8: #{tpu_custom_call.1} parent=1 // pred_region
      %s26 = ssub.s32 256, 256
      %27 = vsyncadd [#allocation6], %s26
      %s28 = sshll.u32 [#allocation5], 4
      %s29 = int_to_ptr.vmem [resolvable:$true] %s28
      %34 = dma.hbm_to_vmem [thread:$0]  %s1, 256, %s29, [#allocation6], 64, 64, 4
    $region9: #{tpu_custom_call.1} parent=1 // pred_fallthru
      _
    // Predicated region
    $region10: #{tpu_custom_call.1} parent=1 // pred_check
      _
    $region11: #{tpu_custom_call.1} parent=1 // pred_check_branch
      %36 = sbr.rel (0) target = $region13
    $region12: #{tpu_custom_call.1} parent=1 // pred_region
      _
    $region13: #{tpu_custom_call.1} parent=1 // pred_fallthru
      _
    // Predicated region
    $region14: #{tpu_custom_call.1} parent=1 // pred_check
      _
    $region15: #{tpu_custom_call.1} parent=1 // pred_check_branch
      %38 = sbr.rel (0) target = $region17
    $region16: #{tpu_custom_call.1} parent=1 // pred_region
      %39 = dma.done [#allocation3], 256
    $region17: #{tpu_custom_call.1} parent=1 // pred_fallthru
      _
    // Predicated region
    $region18: #{tpu_custom_call.1} parent=1 // pred_check
      _
    $region19: #{tpu_custom_call.1} parent=1 // pred_check_branch
      %41 = sbr.rel (0) target = $region21
    $region20: #{tpu_custom_call.1} parent=1 // pred_region
      %42 = dma.done [#allocation6], 256
    $region21: #{tpu_custom_call.1} parent=1 // pred_fallthru
      _
    %v44 = vld [vmem:[#allocation2] sm:$0xff]
    %v45 = vld [vmem:[#allocation2 + $0x8] sm:$0xff]
    %v46 = vpack.c.bf16 %v45, %v44
    %v47 = vld [vmem:[#allocation5] sm:$0xf]
    %v48 = vld [vmem:[#allocation5 + $0x4] sm:$0xf]
    %v49 = vld [vmem:[#allocation5 + $0x8] sm:$0xf]
    %v50 = vld [vmem:[#allocation5 + $0xc] sm:$0xf]
    %v51 = vld [vmem:[%s2] sm:$0x1]
    %v53 = vlaneseq
    %v54 = vshrl.u32 %v53, 7
    %v55 = vsub.s32 0, %v54
    %v56 = vrot.slane %v51, %v55
    %v62 = vunpack.c.l.b16 %v47
    %v63 = vunpack.c.l.b16 %v48
    %v64 = vunpack.c.l.b16 %v49
    %v65 = vunpack.c.l.b16 %v50
    %v66 = vpack.c.b16 %v63, %v62
    %v67 = vpack.c.b16 %v65, %v64
    %vm70 = vcmask 261120
    %v72 = vsel %vm70, %v46, 0
    %74 = vmatprep.subr.bf16.mxu0 0
    %75 = vmatpush1.bf16.msra.mxu0 0
    %76 = vmatprep.subr.bf16.mxu0 0
    %77 = vmatpush1.bf16.msra.mxu0 0
    %78 = vmatprep.subr.bf16.mxu0 0
    %79 = vmatpush1.bf16.msra.mxu0 0
    %80 = vmatprep.subr.bf16.mxu0 0
    %81 = vmatpush1.bf16.msra.mxu0 0
    %82 = vmatprep.subr.bf16.mxu0 0
    %83 = vmatpush1.bf16.msra.mxu0 0
    %84 = vmatprep.subr.bf16.mxu0 0
    %85 = vmatpush1.bf16.msra.mxu0 0
    %86 = vmatprep.subr.bf16.mxu0 0
    %87 = vmatpush1.bf16.msra.mxu0 %v67
    %88 = vmatprep.subr.bf16.mxu0 0
    %89 = vmatpush1.bf16.msra.mxu0 %v66
    %90 = vmatprep.subr.bf16.mxu0 0
    %91 = vmatpush2.bf16.msra.mxu0 0
    %92 = vmatprep.subr.bf16.mxu0 0
    %93 = vmatpush2.bf16.msra.mxu0 0
    %94 = vmatprep.subr.bf16.mxu0 0
    %95 = vmatpush2.bf16.msra.mxu0 0
    %96 = vmatprep.subr.bf16.mxu0 0
    %97 = vmatpush2.bf16.msra.mxu0 0
    %98 = vmatprep.subr.bf16.mxu0 0
    %99 = vmatpush2.bf16.msra.mxu0 0
    %100 = vmatprep.subr.bf16.mxu0 0
    %101 = vmatpush2.bf16.msra.mxu0 0
    %102 = vmatprep.subr.bf16.mxu0 0
    %103 = vmatpush2.bf16.msra.mxu0 0
    %104 = vmatprep.subr.bf16.mxu0 0
    %105 = vmatpush2.bf16.msra.mxu0 0
    %106 = vmatprep.mubr.bf16.mxu0 0
    %107 = vmatmul.mubr.bf16.gmra.mxu0 %v72
    %v108 = vpop.f32.mrf.mxu0
    %v109 = vadd.f32 %v56, %v108
    %v110 = vpop.f32.mrf.mxu0
    %v111 = vpop.f32.mrf.mxu0
    %v112 = vadd.f32 %v56, %v111
    %v113 = vpop.f32.mrf.mxu0
    %114 = vdwg.mxu0
    %v115 = vmul.f32 %v109, 0.5
    %v116 = vmul.f32 %v112, 0.5
    %v117 = vmul.f32 %v109, 0.70710677
    %v118 = vmul.f32 %v112, 0.70710677
    %v119 = verf.f32.pop %v117
    %v120 = verf.f32.pop %v118
    %v121 = vadd.f32 %v119, 1.0
    %v122 = vadd.f32 %v120, 1.0
    %v123 = vmul.f32 %v115, %v121
    %v124 = vmul.f32 %v116, %v122
    %125 = vst [vmem:[#allocation7] sm:$0xff] %v123
    %126 = vst [vmem:[#allocation7 + $0x8] sm:$0xff] %v124
    // Predicated region
    $region22: #{tpu_custom_call.1} parent=1 // pred_check
      _
    $region23: #{tpu_custom_call.1} parent=1 // pred_check_branch
      %128 = sbr.rel (0) target = $region25
    $region24: #{tpu_custom_call.1} parent=1 // pred_region
      %s130 = ssub.s32 256, 256
      %131 = vsyncadd [#allocation4], %s130
      %s132 = sshll.u32 [#allocation7], 4
      %s133 = int_to_ptr.vmem [resolvable:$true] %s132
      %138 = dma.vmem_to_hbm [thread:$0]  %s133, 256, %s3, [#allocation4], 128, 128, 8
    $region25: #{tpu_custom_call.1} parent=1 // pred_fallthru
      _
    // Predicated region
    $region26: #{tpu_custom_call.1} parent=1 // pred_check
      _
    $region27: #{tpu_custom_call.1} parent=1 // pred_check_branch
      %140 = sbr.rel (0) target = $region29
    $region28: #{tpu_custom_call.1} parent=1 // pred_region
      %141 = dma.done [#allocation4], 256
    $region29: #{tpu_custom_call.1} parent=1 // pred_fallthru
      _
    %142 = vsyncpa [#allocation3], 1
    %143 = vsyncpa [#allocation6], 1
    %144 = vsyncpa [#allocation4], 1

</llo_original>
